<compile_context>
chip_gen: v7x
topology: tpu7x:2x2x1
jax: 0.10.0
libtpu: 0.0.40
codegen_flags: <defaults>
</compile_context>

<pallas_src>
import functools

import jax
import jax.numpy as jnp
from jax.experimental import pallas as pl
from jax.experimental.pallas import tpu as pltpu

VOCAB = 48  # nn.Embedding(48, d_embedding)


def _round_up(x, m):
    return (x + m - 1) // m * m


def _hour_embedding_kernel(idx_ref, fused_ref, o_ref):
    # idx_ref:   (TN, 1)    int32   -- hour indices for this row tile
    # fused_ref: (48, DMP)  float32 -- emb_table @ W^T + bias (bias folded in)
    # o_ref:     (TN, DMP)  float32
    idx = idx_ref[...]                                        # (TN, 1)
    tn = idx.shape[0]

    # Gather-as-matmul: one-hot encode indices, single MXU pass over the fused table.
    lane_iota = jax.lax.broadcasted_iota(jnp.int32, (tn, VOCAB), 1)
    onehot = (idx == lane_iota).astype(jnp.float32)           # (TN, 48)
    o_ref[...] = jnp.dot(onehot, fused_ref[...],
                         preferred_element_type=jnp.float32).astype(o_ref.dtype)


def _pick_row_tile(requested, n_rows, dmp):
    """Largest multiple-of-8 row tile <= requested that fits a ~24 MiB VMEM budget."""
    rt = min(_round_up(max(requested, 8), 8), _round_up(n_rows, 8))

    def vmem_bytes(t):
        out_b = 2 * t * dmp * 4           # double-buffered output tiles
        idx_b = 2 * t * 128 * 4           # idx tiles (lane-padded to 128)
        tab_b = 2 * VOCAB * dmp * 4       # resident fused table
        tmp_b = t * 128 * 4 + t * dmp * 4 # onehot + matmul temporaries
        return out_b + idx_b + tab_b + tmp_b

    while rt > 8 and vmem_bytes(rt) > (24 << 20):  # leave headroom for v7x (64 MiB phys)
        rt = _round_up(rt // 2, 8)
    return rt, vmem_bytes(rt)


@functools.partial(jax.jit, static_argnames=("row_tile",))
def hour_embedding(x, emb_table, lin_weight, lin_bias, *, row_tile=512):
    """x: (B, S) int indices in [0, 48). Returns (B, S, d_model) float32."""
    B, S = x.shape
    d_model = lin_weight.shape[0]
    N = B * S

    # Fold the two matmuls and the bias into one small (48, d_model) table.
    # Exact because every one-hot row sums to 1 for a valid index.
    fused = jnp.dot(emb_table, lin_weight.T,
                    preferred_element_type=jnp.float32) + lin_bias[None, :].astype(jnp.float32)

    # Lane-dense output: pad d_model up to a multiple of 128, slice afterwards.
    dmp = _round_up(d_model, 128)
    if dmp != d_model:
        fused = jnp.pad(fused, ((0, 0), (0, dmp - d_model)))

    rt, vmem_need = _pick_row_tile(row_tile, N, dmp)
    Np = _round_up(N, rt)

    idx = x.reshape(N).astype(jnp.int32)
    if Np != N:
        idx = jnp.pad(idx, (0, Np - N))   # pad with index 0 (valid); rows sliced off below
    idx = idx.reshape(Np, 1)

    vmem_limit = min(max(vmem_need + (4 << 20), 16 << 20), 32 << 20)

    out = pl.pallas_call(
        _hour_embedding_kernel,
        out_shape=jax.ShapeDtypeStruct((Np, dmp), jnp.float32),
        grid_spec=pltpu.PrefetchScalarGridSpec(
            num_scalar_prefetch=0,
            grid=(Np // rt,),
            in_specs=[
                pl.BlockSpec((rt, 1), lambda i: (i, 0)),        # index row-tile
                pl.BlockSpec((VOCAB, dmp), lambda i: (0, 0)),   # fused table (resident)
            ],
            out_specs=pl.BlockSpec((rt, dmp), lambda i: (i, 0)),
        ),
        compiler_params=pltpu.CompilerParams(
            dimension_semantics=("parallel",),   # lets v7x shard tiles across both TCs
            vmem_limit_bytes=vmem_limit),
    )(idx, fused)

    # TODO(synk): out-of-range indices produce a zero row (nn.Embedding would raise).
    return out[:N, :d_model].reshape(B, S, d_model)


def _reference(x, emb_table, lin_weight, lin_bias):
    return emb_table[x] @ lin_weight.T + lin_bias


if __name__ == "__main__":
    key = jax.random.PRNGKey(0)

    # Config 1: small, lane-aligned d_model.
    B, S, d_embedding, d_model = 2, 8, 32, 128
    k_idx, k_emb, k_w, k_b, key = jax.random.split(key, 5)
    x = jax.random.randint(k_idx, (B, S), 0, VOCAB, dtype=jnp.int32)
    emb_table = jax.random.normal(k_emb, (VOCAB, d_embedding), jnp.float32)
    lin_weight = jax.random.normal(k_w, (d_model, d_embedding), jnp.float32) * 0.05
    lin_bias = jax.random.normal(k_b, (d_model,), jnp.float32) * 0.05

    out = jax.block_until_ready(hour_embedding(x, emb_table, lin_weight, lin_bias))
    ref = _reference(x, emb_table, lin_weight, lin_bias)
    assert out.shape == (B, S, d_model)
    assert jnp.allclose(out, ref, atol=1e-4, rtol=1e-4), "mismatch vs reference (config 1)"

    # Config 2: ragged N and non-multiple-of-128 d_model (exercises padding paths).
    B2, S2, d_emb2, d_model2 = 3, 5, 16, 80
    k_idx, k_emb, k_w, k_b, key = jax.random.split(key, 5)
    x2 = jax.random.randint(k_idx, (B2, S2), 0, VOCAB, dtype=jnp.int32)
    emb_table2 = jax.random.normal(k_emb, (VOCAB, d_emb2), jnp.float32)
    lin_weight2 = jax.random.normal(k_w, (d_model2, d_emb2), jnp.float32) * 0.05
    lin_bias2 = jax.random.normal(k_b, (d_model2,), jnp.float32) * 0.05

    out2 = jax.block_until_ready(hour_embedding(x2, emb_table2, lin_weight2, lin_bias2))
    ref2 = _reference(x2, emb_table2, lin_weight2, lin_bias2)
    assert out2.shape == (B2, S2, d_model2)
    assert jnp.allclose(out2, ref2, atol=1e-4, rtol=1e-4), "mismatch vs reference (config 2)"

    print("KERNEL_OK")
</pallas_src>

<mosaic_0001>
module attributes {stable_mosaic.version = 11 : i64} {
  func.func @_hour_embedding_kernel(%arg0: i32, %arg1: memref<16x1xi32, #tpu.memory_space<vmem>>, %arg2: memref<48x128xf32, #tpu.memory_space<vmem>>, %arg3: memref<16x128xf32, #tpu.memory_space<vmem>>) attributes {dimension_semantics = [#tpu.dimension_semantics<parallel>], iteration_bounds = array<i64: 1>, scalar_prefetch = 0 : i64, scratch_operands = 0 : i64, tpu.core_type = #tpu.core_type<tc>, window_params = [{transform_indices = @transform_0, window_bounds = array<i64: 16, 1>}, {pipeline_mode = #tpu.pipeline_mode<synchronous>, transform_indices = @transform_1, window_bounds = array<i64: 48, 128>}, {transform_indices = @transform_2, window_bounds = array<i64: 16, 128>}]} {
    %c0 = arith.constant 0 : index
    %c0_0 = arith.constant 0 : index
    %0 = vector.load %arg1[%c0, %c0_0] : memref<16x1xi32, #tpu.memory_space<vmem>>, vector<16x1xi32>
    %1 = tpu.iota {dimensions = array<i32: 1>} : vector<16x48xi32>
    %2 = vector.broadcast %0 : vector<16x1xi32> to vector<16x48xi32>
    %3 = arith.cmpi eq, %2, %1 : vector<16x48xi32>
    %4 = arith.extui %3 : vector<16x48xi1> to vector<16x48xi32>
    %5 = arith.sitofp %4 : vector<16x48xi32> to vector<16x48xf32>
    %c0_1 = arith.constant 0 : index
    %c0_2 = arith.constant 0 : index
    %6 = vector.load %arg2[%c0_1, %c0_2] : memref<48x128xf32, #tpu.memory_space<vmem>>, vector<48x128xf32>
    %cst = arith.constant dense<0.000000e+00> : vector<16x128xf32>
    %7 = tpu.matmul %5, %6, %cst {dimension_numbers = #tpu.dot_dimension_numbers<[1], [0], [0], [1], [0, 0, 1, 1], [], []>} : vector<16x48xf32>, vector<48x128xf32>, vector<16x128xf32> -> vector<16x128xf32>
    %c0_3 = arith.constant 0 : index
    %c0_4 = arith.constant 0 : index
    %8 = vector.load %arg3[%c0_3, %c0_4] : memref<16x128xf32, #tpu.memory_space<vmem>>, vector<16x128xf32>
    tpu.vector_store %arg3[%c0_3, %c0_4], %7 {strides = array<i32>} : memref<16x128xf32, #tpu.memory_space<vmem>>, vector<16x128xf32>,
    return
  }
  func.func @transform_0(%arg0: i32) -> (i32, i32) {
    %c0_i32 = arith.constant 0 : i32
    %c0_i32_0 = arith.constant 0 : i32
    return %arg0, %c0_i32 : i32, i32
  }
  func.func @transform_1(%arg0: i32) -> (i32, i32) {
    %c0_i32 = arith.constant 0 : i32
    %c0_i32_0 = arith.constant 0 : i32
    %c0_i32_1 = arith.constant 0 : i32
    return %c0_i32, %c0_i32_0 : i32, i32
  }
  func.func @transform_2(%arg0: i32) -> (i32, i32) {
    %c0_i32 = arith.constant 0 : i32
    %c0_i32_0 = arith.constant 0 : i32
    return %arg0, %c0_i32 : i32, i32
  }
}

</mosaic_0001>

<llo_original>
// kernel: hour_embedding.1
$region0: #{hour_embedding.1}
  #allocation0 [shape = 'u32[]', space=smem, size = 0x4, offset = 0x4, fixed_abs, tag = 'smem constant byte address 0x4 - core index']
  #allocation1 [shape = 'u32[144,128]{1,0:T(1,128)}', space=vmem, size = 0x12000, scoped, tag = 'internal scratch']
  %s0 = inlined_call_operand.vmem [shape: s32[16,1], index: 0, kind: input, shape index: {}]
  %s1 = inlined_call_operand.vmem [shape: f32[48,128], index: 1, kind: input, shape index: {}]
  %s2 = inlined_call_operand.hbm [shape: f32[16,128], index: 2, kind: output, shape index: {}]
  %s3 = sld [smem:[#allocation0]]
  $region18: #{hour_embedding.1} parent=0
    _
  %s5 = ssub.s32 1, %s3
  %s6 = scalar_select 0, %s5, %s3
  $region1: #{hour_embedding.1} parent=0
    #allocation2 [shape = 'u8[8192]{0}', space=vmem, size = 0x2000, scoped, tag = 'output window, operand 0, single buffered']
    #allocation3 [shape = 's32[1]{0}', space=sflag, size = 0x4, scoped, tag = 'scoped memory for hour_embedding.1']
    %7 = vsyncpa [#allocation3], 0
    // Predicated region
    $region2: #{hour_embedding.1} parent=1 // pred_check
      _
    $region3: #{hour_embedding.1} parent=1 // pred_check_branch
      %9 = sbr.rel (0) target = $region5
    $region4: #{hour_embedding.1} parent=1 // pred_region
      _
    $region5: #{hour_embedding.1} parent=1 // pred_fallthru
      _
    // Predicated region
    $region6: #{hour_embedding.1} parent=1 // pred_check
      _
    $region7: #{hour_embedding.1} parent=1 // pred_check_branch
      %11 = sbr.rel (0) target = $region9
    $region8: #{hour_embedding.1} parent=1 // pred_region
      _
    $region9: #{hour_embedding.1} parent=1 // pred_fallthru
      _
    %v12 = vld [vmem:[%s0] sm:$0xff]
    %v13 = vld [vmem:[%s0 + $0x8] sm:$0xff]
    %v14 = vlaneseq
    %v15 = vand.u32 %v14, 127
    %16 = vset.pattern.permute.xlu0 0
    %17 = vperm.xlu0 %16, %v12
    %v18 = vpop.permute.xlu0 %17
    %19 = vset.pattern.permute.xlu0 0
    %20 = vperm.xlu0 %19, %v13
    %v21 = vpop.permute.xlu0 %20
    %vm22 = vcmp.eq.s32.totalorder %v18, %v15
    %vm23 = vcmp.eq.s32.totalorder %v21, %v15
    %v24 = vsel %vm22, 1, 0
    %v25 = vsel %vm23, 1, 0
    %v26 = vcvt.s32.f32 %v24
    %v27 = vcvt.s32.f32 %v25
    %v28 = vld [vmem:[%s1] sm:$0xff]
    %v29 = vld [vmem:[%s1 + $0x8] sm:$0xff]
    %v30 = vld [vmem:[%s1 + $0x10] sm:$0xff]
    %v31 = vld [vmem:[%s1 + $0x18] sm:$0xff]
    %v32 = vld [vmem:[%s1 + $0x20] sm:$0xff]
    %v33 = vld [vmem:[%s1 + $0x28] sm:$0xff]
    %vm34 = vcmask 392192
    %v36 = vsel %vm34, %v26, 0
    %v39 = vsel %vm34, %v27, 0
    %41 = vmatprep.subr.mxu0 0.0
    %42 = vmatpush1.msra.mxu0 %v28
    %43 = vmatprep.subr.mxu0 0.0
    %44 = vmatpush1.msra.mxu0 %v29
    %45 = vmatprep.subr.mxu0 0.0
    %46 = vmatpush1.msra.mxu0 %v30
    %47 = vmatprep.subr.mxu0 0.0
    %48 = vmatpush1.msra.mxu0 %v31
    %49 = vmatprep.subr.mxu0 0.0
    %50 = vmatpush1.msra.mxu0 %v32
    %51 = vmatprep.subr.mxu0 0.0
    %52 = vmatpush1.msra.mxu0 %v33
    %53 = vmatprep.subr.mxu0 0.0
    %54 = vmatpush1.msra.mxu0 0.0
    %55 = vmatprep.subr.mxu0 0.0
    %56 = vmatpush1.msra.mxu0 0.0
    %57 = vmatprep.subr.mxu0 0.0
    %58 = vmatpush1.msra.mxu0 0.0
    %59 = vmatprep.subr.mxu0 0.0
    %60 = vmatpush1.msra.mxu0 0.0
    %61 = vmatprep.subr.mxu0 0.0
    %62 = vmatpush1.msra.mxu0 0.0
    %63 = vmatprep.subr.mxu0 0.0
    %64 = vmatpush1.msra.mxu0 0.0
    %65 = vmatprep.subr.mxu0 0.0
    %66 = vmatpush1.msra.mxu0 0.0
    %67 = vmatprep.subr.mxu0 0.0
    %68 = vmatpush1.msra.mxu0 0.0
    %69 = vmatprep.subr.mxu0 0.0
    %70 = vmatpush1.msra.mxu0 0.0
    %71 = vmatprep.subr.mxu0 0.0
    %72 = vmatpush1.msra.mxu0 0.0
    %73 = vmatprep.subr.mxu0 0.0
    %74 = vmatpush1.msra.mxu0 0.0
    %75 = vmatprep.subr.mxu0 0.0
    %76 = vmatpush1.msra.mxu0 0.0
    %77 = vmatprep.subr.mxu0 0.0
    %78 = vmatpush1.msra.mxu0 0.0
    %79 = vmatprep.subr.mxu0 0.0
    %80 = vmatpush1.msra.mxu0 0.0
    %81 = vmatprep.subr.mxu0 0.0
    %82 = vmatpush1.msra.mxu0 0.0
    %83 = vmatprep.subr.mxu0 0.0
    %84 = vmatpush1.msra.mxu0 0.0
    %85 = vmatprep.subr.mxu0 0.0
    %86 = vmatpush1.msra.mxu0 0.0
    %87 = vmatprep.subr.mxu0 0.0
    %88 = vmatpush1.msra.mxu0 0.0
    %89 = vmatprep.subr.mxu0 0.0
    %90 = vmatpush1.msra.mxu0 0.0
    %91 = vmatprep.subr.mxu0 0.0
    %92 = vmatpush1.msra.mxu0 0.0
    %93 = vmatprep.subr.mxu0 0.0
    %94 = vmatpush1.msra.mxu0 0.0
    %95 = vmatprep.subr.mxu0 0.0
    %96 = vmatpush1.msra.mxu0 0.0
    %97 = vmatprep.subr.mxu0 0.0
    %98 = vmatpush1.msra.mxu0 0.0
    %99 = vmatprep.subr.mxu0 0.0
    %100 = vmatpush1.msra.mxu0 0.0
    %101 = vmatprep.subr.mxu0 0.0
    %102 = vmatpush1.msra.mxu0 0.0
    %103 = vmatprep.subr.mxu0 0.0
    %104 = vmatpush1.msra.mxu0 0.0
    %105 = vmatprep.mubr.f32.mxu0 0.0
    %106 = vmatmul.mubr.f32.gmra.mrb[0].mxu0 %v36
    %v107 = vpop.f32.mrb[0].mxu0
    %v108 = vadd.f32 0.0, %v107
    %v109 = vpop.f32.mrb[0].mxu0
    %110 = vmatprep.mubr.f32.mxu0 0.0
    %111 = vmatmul.mubr.f32.gmra.mrb[0].mxu0 %v39
    %v112 = vpop.f32.mrb[0].mxu0
    %v113 = vadd.f32 0.0, %v112
    %v114 = vpop.f32.mrb[0].mxu0
    %115 = vdwg.mxu0
    %116 = vst [vmem:[#allocation2] sm:$0xff] %v108
    %117 = vst [vmem:[#allocation2 + $0x8] sm:$0xff] %v113
    // Predicated region
    $region10: #{hour_embedding.1} parent=1 // pred_check
      _
    $region11: #{hour_embedding.1} parent=1 // pred_check_branch
      %119 = sbr.rel (0) target = $region13
    $region12: #{hour_embedding.1} parent=1 // pred_region
      %s121 = ssub.s32 256, 256
      %122 = vsyncadd [#allocation3], %s121
      %s123 = sshll.u32 [#allocation2], 4
      %s124 = int_to_ptr.vmem [resolvable:$true] %s123
      %129 = dma.vmem_to_hbm [thread:$0]  %s124, 256, %s2, [#allocation3], 128, 128, 8
    $region13: #{hour_embedding.1} parent=1 // pred_fallthru
      _
    // Predicated region
    $region14: #{hour_embedding.1} parent=1 // pred_check
      _
    $region15: #{hour_embedding.1} parent=1 // pred_check_branch
      %131 = sbr.rel (0) target = $region17
    $region16: #{hour_embedding.1} parent=1 // pred_region
      %132 = dma.done [#allocation3], 256
    $region17: #{hour_embedding.1} parent=1 // pred_fallthru
      _
    %133 = vsyncpa [#allocation3], 1

</llo_original>
